<compile_context>
chip_gen: v7x
topology: tpu7x:2x2x1
jax: 0.10.0
libtpu: 0.0.40
codegen_flags: <defaults>
</compile_context>

<pallas_src>
import functools

import numpy as np
import jax
import jax.numpy as jnp
from jax.experimental import pallas as pl
from jax.experimental.pallas import tpu as pltpu

_LANES = 128


def _round_up(x, m):
    return ((x + m - 1) // m) * m


def _time_encoder_kernel(ts_ref, freq_ref, phase_ref, sel_ref, out_ref):
    # ts_ref:    (TBp, P)    P original batch rows packed per packed-row
    # freq_ref:  (1, P*D)    basis_freq tiled P times along lanes (resident)
    # phase_ref: (1, P*D)    phase tiled P times along lanes (resident)
    # sel_ref:   (P, P*D)    0/1 selector: sel[k, k*D + d] = 1
    # out_ref:   (TBp, P*D)  lane-dense packed output
    #
    # MXU broadcasts ts[:, k] across its D-wide lane segment; VPU does the
    # f32 scale/shift; EUP does the cosine; cast only at the store.
    ts_rep = jnp.dot(ts_ref[...], sel_ref[...], preferred_element_type=jnp.float32)
    out_ref[...] = jnp.cos(ts_rep * freq_ref[...] + phase_ref[...]).astype(out_ref.dtype)


@functools.partial(jax.jit, static_argnames=("block_rows", "out_dtype"))
def time_encoder(ts_diff, basis_freq, phase, *, block_rows=1024, out_dtype=jnp.float32):
    """TGN sinusoidal time encoding.

    ts_diff: (B, 1) float; basis_freq/phase: (D,) float  ->  (B, D) out_dtype.
    """
    B = ts_diff.shape[0]
    D = basis_freq.shape[0]

    ts = ts_diff.astype(jnp.float32).reshape(B, 1)
    freq = basis_freq.astype(jnp.float32).reshape(D)
    ph = phase.astype(jnp.float32).reshape(D)

    # Pack factor: P rows per lane-dense (width 128) output row when possible;
    # otherwise fall back to P=1 (masked stores only when D % 128 != 0).
    P = _LANES // D if (D <= _LANES and _LANES % D == 0) else 1
    DP = P * D

    # Packed-row tile: multiple of 8 sublanes; pad batch so the grid covers
    # whole tiles only (padded rows sliced off below -> never observed).
    Bp = pl.cdiv(B, P)
    TBp = min(block_rows, _round_up(Bp, 8))
    Bp_pad = _round_up(Bp, TBp)
    B_pad = Bp_pad * P

    ts_packed = jnp.pad(ts, ((0, B_pad - B), (0, 0))).reshape(Bp_pad, P)
    freq_p = jnp.tile(freq, P).reshape(1, DP)
    phase_p = jnp.tile(ph, P).reshape(1, DP)

    # Block-diagonal 0/1 broadcast selector: sel[k, k*D + d] = 1.
    sel = jnp.asarray(np.kron(np.eye(P, dtype=np.float32),
                              np.ones((1, D), np.float32)))

    grid = (Bp_pad // TBp,)

    out_packed = pl.pallas_call(
        _time_encoder_kernel,
        out_shape=jax.ShapeDtypeStruct((Bp_pad, DP), out_dtype),
        grid=grid,
        in_specs=[
            pl.BlockSpec((TBp, P), lambda i: (i, 0)),
            pl.BlockSpec((1, DP), lambda i: (0, 0)),   # constant block -> resident
            pl.BlockSpec((1, DP), lambda i: (0, 0)),
            pl.BlockSpec((P, DP), lambda i: (0, 0)),
        ],
        out_specs=pl.BlockSpec((TBp, DP), lambda i: (i, 0)),
        compiler_params=pltpu.CompilerParams(
            dimension_semantics=("parallel",),
        ),
    )(ts_packed, freq_p, phase_p, sel)

    # (Bp_pad, P*D) row-major is exactly (Bp_pad*P, D); drop batch padding.
    return out_packed.reshape(B_pad, D)[:B]


def init_time_encoder_params(time_dim):
    """Deterministic init matching TimeEncoder.__init__."""
    basis_freq = (1.0 / 10.0 ** np.linspace(0, 9, time_dim)).astype(np.float32)
    phase = np.zeros(time_dim, dtype=np.float32)
    return jnp.asarray(basis_freq), jnp.asarray(phase)


if __name__ == "__main__":
    batch_size = 8
    time_dim = 32

    key = jax.random.PRNGKey(0)
    ts_diff = jax.random.uniform(
        key, (batch_size, 1), dtype=jnp.float32, minval=0.0, maxval=100.0
    )
    basis_freq, phase = init_time_encoder_params(time_dim)

    out = time_encoder(ts_diff, basis_freq, phase)
    out = jax.block_until_ready(out)

    ref = jnp.cos(ts_diff * basis_freq.reshape(1, -1) + phase.reshape(1, -1))
    assert out.shape == (batch_size, time_dim)
    assert jnp.allclose(out, ref, atol=1e-5), "mismatch vs reference (small batch)"

    # Batch not divisible by pack factor or tile -> exercises padding path.
    B2 = 1000
    ts2 = jax.random.uniform(
        jax.random.PRNGKey(1), (B2, 1), dtype=jnp.float32, minval=0.0, maxval=100.0
    )
    out2 = jax.block_until_ready(time_encoder(ts2, basis_freq, phase))
    ref2 = jnp.cos(ts2 * basis_freq.reshape(1, -1) + phase.reshape(1, -1))
    assert out2.shape == (B2, time_dim)
    assert jnp.allclose(out2, ref2, atol=1e-5), "mismatch vs reference (padded batch)"

    print("KERNEL_OK")
</pallas_src>

<mosaic_0001>
module attributes {stable_mosaic.version = 11 : i64} {
  func.func @_time_encoder_kernel(%arg0: i32, %arg1: memref<8x4xf32, #tpu.memory_space<vmem>>, %arg2: memref<1x128xf32, #tpu.memory_space<vmem>>, %arg3: memref<1x128xf32, #tpu.memory_space<vmem>>, %arg4: memref<4x128xf32, #tpu.memory_space<vmem>>, %arg5: memref<8x128xf32, #tpu.memory_space<vmem>>) attributes {dimension_semantics = [#tpu.dimension_semantics<parallel>], iteration_bounds = array<i64: 1>, scalar_prefetch = 0 : i64, scratch_operands = 0 : i64, tpu.core_type = #tpu.core_type<tc>, window_params = [{transform_indices = @transform_0, window_bounds = array<i64: 8, 4>}, {pipeline_mode = #tpu.pipeline_mode<synchronous>, transform_indices = @transform_1, window_bounds = array<i64: 1, 128>}, {pipeline_mode = #tpu.pipeline_mode<synchronous>, transform_indices = @transform_2, window_bounds = array<i64: 1, 128>}, {pipeline_mode = #tpu.pipeline_mode<synchronous>, transform_indices = @transform_3, window_bounds = array<i64: 4, 128>}, {transform_indices = @transform_4, window_bounds = array<i64: 8, 128>}]} {
    %c0 = arith.constant 0 : index
    %c0_0 = arith.constant 0 : index
    %0 = vector.load %arg1[%c0, %c0_0] : memref<8x4xf32, #tpu.memory_space<vmem>>, vector<8x4xf32>
    %c0_1 = arith.constant 0 : index
    %c0_2 = arith.constant 0 : index
    %1 = vector.load %arg4[%c0_1, %c0_2] : memref<4x128xf32, #tpu.memory_space<vmem>>, vector<4x128xf32>
    %cst = arith.constant dense<0.000000e+00> : vector<8x128xf32>
    %2 = tpu.matmul %0, %1, %cst {dimension_numbers = #tpu.dot_dimension_numbers<[1], [0], [0], [1], [0, 0, 1, 1], [], []>} : vector<8x4xf32>, vector<4x128xf32>, vector<8x128xf32> -> vector<8x128xf32>
    %c0_3 = arith.constant 0 : index
    %c0_4 = arith.constant 0 : index
    %3 = vector.load %arg2[%c0_3, %c0_4] : memref<1x128xf32, #tpu.memory_space<vmem>>, vector<1x128xf32>
    %4 = vector.broadcast %3 : vector<1x128xf32> to vector<8x128xf32>
    %5 = arith.mulf %2, %4 : vector<8x128xf32>
    %c0_5 = arith.constant 0 : index
    %c0_6 = arith.constant 0 : index
    %6 = vector.load %arg3[%c0_5, %c0_6] : memref<1x128xf32, #tpu.memory_space<vmem>>, vector<1x128xf32>
    %7 = vector.broadcast %6 : vector<1x128xf32> to vector<8x128xf32>
    %8 = arith.addf %5, %7 : vector<8x128xf32>
    %9 = math.cos %8 : vector<8x128xf32>
    %c0_7 = arith.constant 0 : index
    %c0_8 = arith.constant 0 : index
    %10 = vector.load %arg5[%c0_7, %c0_8] : memref<8x128xf32, #tpu.memory_space<vmem>>, vector<8x128xf32>
    tpu.vector_store %arg5[%c0_7, %c0_8], %9 {strides = array<i32>} : memref<8x128xf32, #tpu.memory_space<vmem>>, vector<8x128xf32>,
    return
  }
  func.func @transform_0(%arg0: i32) -> (i32, i32) {
    %c0_i32 = arith.constant 0 : i32
    %c0_i32_0 = arith.constant 0 : i32
    return %arg0, %c0_i32 : i32, i32
  }
  func.func @transform_1(%arg0: i32) -> (i32, i32) {
    %c0_i32 = arith.constant 0 : i32
    %c0_i32_0 = arith.constant 0 : i32
    %c0_i32_1 = arith.constant 0 : i32
    return %c0_i32, %c0_i32_0 : i32, i32
  }
  func.func @transform_2(%arg0: i32) -> (i32, i32) {
    %c0_i32 = arith.constant 0 : i32
    %c0_i32_0 = arith.constant 0 : i32
    %c0_i32_1 = arith.constant 0 : i32
    return %c0_i32, %c0_i32_0 : i32, i32
  }
  func.func @transform_3(%arg0: i32) -> (i32, i32) {
    %c0_i32 = arith.constant 0 : i32
    %c0_i32_0 = arith.constant 0 : i32
    %c0_i32_1 = arith.constant 0 : i32
    return %c0_i32, %c0_i32_0 : i32, i32
  }
  func.func @transform_4(%arg0: i32) -> (i32, i32) {
    %c0_i32 = arith.constant 0 : i32
    %c0_i32_0 = arith.constant 0 : i32
    return %arg0, %c0_i32 : i32, i32
  }
}

</mosaic_0001>

<llo_original>
// kernel: tile.13
$region0: #{tile.13}
  #allocation0 [shape = 's32[1]{0}', space=sflag, size = 0x4, scoped, tag = 'scoped memory for tile.13']
  %s0 = inlined_call_operand.vmem [shape: f32[32], index: 0, kind: input, shape index: {}]
  %s1 = inlined_call_operand.vmem [shape: f32[4,32], index: 1, kind: output, shape index: {}]
  // Predicated region
  $region2: #{tile.13} parent=0 // pred_check
    _
  $region3: #{tile.13} parent=0 // pred_check_branch
    %3 = sbr.rel (0) target = $region5
  $region4: #{tile.13} parent=0 // pred_region
    _
  $region5: #{tile.13} parent=0 // pred_fallthru
    _
  %v4 = vld [vmem:[%s0] ss:$0 sm:$0xff]
  %5 = vst [vmem:[%s1] sm:$0xf] %v4

// kernel: tile.14
$region0: #{tile.14}
  %s0 = inlined_call_operand.vmem [shape: f32[4,32], index: 0, kind: input, shape index: {}]
  %s1 = inlined_call_operand.vmem [shape: f32[1,128], index: 1, kind: output, shape index: {}]
  $region1: #{tile.14} parent=0
    #allocation0 [shape = 'u8[4096]{0}', space=vmem, size = 0x1000, scoped, tag = 'scoped mem for output reshape']
    #allocation1 [shape = 'u8[4096]{0}', space=vmem, size = 0x1000, scoped, tag = 'scoped mem for input reshape']
    %s3 = sshllo.u32 0, 4
    %v4 = vld [vmem:[%s0] sm:%s3]
    %5 = vst [vmem:[#allocation1] sm:%s3] %v4
    %v6 = vld [vmem:[#allocation1] sm:$0x1]
    %vm7 = vcmask 261120
    %8 = vst.msk [vmem:[#allocation0] sm:$0x1] %vm7, %v6
    %s9 = scalar_lea.vmem [#allocation1], 3
    %v10 = vld [vmem:[%s9] sm:$0x1]
    %11 = vrot.lane.b32.xlu0 %v10, 96
    %v12 = vpop.permute.xlu0 %11
    %vm13 = vcmask 1048320
    %14 = vst.msk [vmem:[#allocation0] sm:$0x1] %vm13, %v12
    %s15 = scalar_lea.vmem [#allocation1], 2
    %v16 = vld [vmem:[%s15] sm:$0x1]
    %17 = vrot.lane.b32.xlu0 %v16, 64
    %v18 = vpop.permute.xlu0 %17
    %vm19 = vcmask 785920
    %20 = vst.msk [vmem:[#allocation0] sm:$0x1] %vm19, %v18
    %s21 = scalar_lea.vmem [#allocation1], 1
    %v22 = vld [vmem:[%s21] sm:$0x1]
    %23 = vrot.lane.b32.xlu0 %v22, 32
    %v24 = vpop.permute.xlu0 %23
    %vm25 = vcmask 523520
    %26 = vst.msk [vmem:[#allocation0] sm:$0x1] %vm25, %v24
    %s28 = sshllo.u32 0, 1
    %v30 = vld [vmem:[#allocation0] sm:%s28]
    %s31 = sshllo.u32 0, 1
    %32 = vst [vmem:[%s1] sm:%s31] %v30

// kernel: time_encoder.1
$region0: #{time_encoder.1}
  #allocation0 [shape = 'u32[]', space=smem, size = 0x4, offset = 0x4, fixed_abs, tag = 'smem constant byte address 0x4 - core index']
  #allocation1 [shape = 'u32[144,128]{1,0:T(1,128)}', space=vmem, size = 0x12000, scoped, tag = 'internal scratch']
  %s0 = inlined_call_operand.vmem [shape: f32[8,4], index: 0, kind: input, shape index: {}]
  %s1 = inlined_call_operand.vmem [shape: f32[1,128], index: 1, kind: input, shape index: {}]
  %s2 = inlined_call_operand.vmem [shape: f32[1,128], index: 2, kind: input, shape index: {}]
  %s3 = inlined_call_operand.vmem [shape: f32[4,128], index: 3, kind: input, shape index: {}]
  %s4 = inlined_call_operand.vmem [shape: f32[8,128], index: 4, kind: output, shape index: {}]
  %s5 = sld [smem:[#allocation0]]
  $region26: #{time_encoder.1} parent=0
    _
  %s7 = ssub.s32 1, %s5
  %s8 = scalar_select 0, %s7, %s5
  // Predicated region
  $region2: #{time_encoder.1} parent=0 // pred_check
    _
  $region3: #{time_encoder.1} parent=0 // pred_check_branch
    %10 = sbr.rel (0) target = $region5
  $region4: #{time_encoder.1} parent=0 // pred_region
    _
  $region5: #{time_encoder.1} parent=0 // pred_fallthru
    _
  // Predicated region
  $region6: #{time_encoder.1} parent=0 // pred_check
    _
  $region7: #{time_encoder.1} parent=0 // pred_check_branch
    %12 = sbr.rel (0) target = $region9
  $region8: #{time_encoder.1} parent=0 // pred_region
    _
  $region9: #{time_encoder.1} parent=0 // pred_fallthru
    _
  // Predicated region
  $region10: #{time_encoder.1} parent=0 // pred_check
    _
  $region11: #{time_encoder.1} parent=0 // pred_check_branch
    %14 = sbr.rel (0) target = $region13
  $region12: #{time_encoder.1} parent=0 // pred_region
    _
  $region13: #{time_encoder.1} parent=0 // pred_fallthru
    _
  // Predicated region
  $region14: #{time_encoder.1} parent=0 // pred_check
    _
  $region15: #{time_encoder.1} parent=0 // pred_check_branch
    %16 = sbr.rel (0) target = $region17
  $region16: #{time_encoder.1} parent=0 // pred_region
    _
  $region17: #{time_encoder.1} parent=0 // pred_fallthru
    _
  %v17 = vld [vmem:[%s0] sm:$0xff]
  %v18 = vld [vmem:[%s3] sm:$0xf]
  %vm19 = vcmask 31744
  %v21 = vsel %vm19, %v17, 0
  %vm23 = vcmask 1043456
  %v25 = vsel %vm23, %v18, 0
  %27 = vmatprep.subr.mxu0 0.0
  %28 = vmatpush1.msra.mxu0 %v25
  %29 = vmatprep.subr.mxu0 0.0
  %30 = vmatpush1.msra.mxu0 0.0
  %31 = vmatprep.subr.mxu0 0.0
  %32 = vmatpush1.msra.mxu0 0.0
  %33 = vmatprep.subr.mxu0 0.0
  %34 = vmatpush1.msra.mxu0 0.0
  %35 = vmatprep.subr.mxu0 0.0
  %36 = vmatpush1.msra.mxu0 0.0
  %37 = vmatprep.subr.mxu0 0.0
  %38 = vmatpush1.msra.mxu0 0.0
  %39 = vmatprep.subr.mxu0 0.0
  %40 = vmatpush1.msra.mxu0 0.0
  %41 = vmatprep.subr.mxu0 0.0
  %42 = vmatpush1.msra.mxu0 0.0
  %43 = vmatprep.subr.mxu0 0.0
  %44 = vmatpush1.msra.mxu0 0.0
  %45 = vmatprep.subr.mxu0 0.0
  %46 = vmatpush1.msra.mxu0 0.0
  %47 = vmatprep.subr.mxu0 0.0
  %48 = vmatpush1.msra.mxu0 0.0
  %49 = vmatprep.subr.mxu0 0.0
  %50 = vmatpush1.msra.mxu0 0.0
  %51 = vmatprep.subr.mxu0 0.0
  %52 = vmatpush1.msra.mxu0 0.0
  %53 = vmatprep.subr.mxu0 0.0
  %54 = vmatpush1.msra.mxu0 0.0
  %55 = vmatprep.subr.mxu0 0.0
  %56 = vmatpush1.msra.mxu0 0.0
  %57 = vmatprep.subr.mxu0 0.0
  %58 = vmatpush1.msra.mxu0 0.0
  %59 = vmatprep.subr.mxu0 0.0
  %60 = vmatpush1.msra.mxu0 0.0
  %61 = vmatprep.subr.mxu0 0.0
  %62 = vmatpush1.msra.mxu0 0.0
  %63 = vmatprep.subr.mxu0 0.0
  %64 = vmatpush1.msra.mxu0 0.0
  %65 = vmatprep.subr.mxu0 0.0
  %66 = vmatpush1.msra.mxu0 0.0
  %67 = vmatprep.subr.mxu0 0.0
  %68 = vmatpush1.msra.mxu0 0.0
  %69 = vmatprep.subr.mxu0 0.0
  %70 = vmatpush1.msra.mxu0 0.0
  %71 = vmatprep.subr.mxu0 0.0
  %72 = vmatpush1.msra.mxu0 0.0
  %73 = vmatprep.subr.mxu0 0.0
  %74 = vmatpush1.msra.mxu0 0.0
  %75 = vmatprep.subr.mxu0 0.0
  %76 = vmatpush1.msra.mxu0 0.0
  %77 = vmatprep.subr.mxu0 0.0
  %78 = vmatpush1.msra.mxu0 0.0
  %79 = vmatprep.subr.mxu0 0.0
  %80 = vmatpush1.msra.mxu0 0.0
  %81 = vmatprep.subr.mxu0 0.0
  %82 = vmatpush1.msra.mxu0 0.0
  %83 = vmatprep.subr.mxu0 0.0
  %84 = vmatpush1.msra.mxu0 0.0
  %85 = vmatprep.subr.mxu0 0.0
  %86 = vmatpush1.msra.mxu0 0.0
  %87 = vmatprep.subr.mxu0 0.0
  %88 = vmatpush1.msra.mxu0 0.0
  %89 = vmatprep.subr.mxu0 0.0
  %90 = vmatpush1.msra.mxu0 0.0
  %91 = vmatprep.mubr.f32.mxu0 0.0
  %92 = vmatmul.mubr.f32.gmra.mrb[0].mxu0 %v21
  %v93 = vpop.f32.mrb[0].mxu0
  %v94 = vadd.f32 0.0, %v93
  %v95 = vpop.f32.mrb[0].mxu0
  %96 = vdwg.mxu0
  %v97 = vld [vmem:[%s1] sm:$0x1]
  %v99 = vlaneseq
  %v100 = vshrl.u32 %v99, 7
  %v101 = vsub.s32 0, %v100
  %v102 = vrot.slane %v97, %v101
  %v104 = vmul.f32 %v94, %v102
  %v105 = vld [vmem:[%s2] sm:$0x1]
  %v107 = vlaneseq
  %v108 = vshrl.u32 %v107, 7
  %v109 = vsub.s32 0, %v108
  %v110 = vrot.slane %v105, %v109
  %v112 = vadd.f32 %v104, %v110
  %v113 = vand.u32 2147483647, %v112
  %vm114 = vcmp.le.f32.partialorder %v113, 0.7853982
  %vm115 = vcmp.lt.s32.totalorder %v112, 0
  %v116 = vand.u32 %v112, 2139095040
  %v117 = vshrl.u32 %v116, 23
  %v118 = vsub.s32 %v117, 127
  %v119 = vand.u32 2147483647, %v112
  %v120 = vand.u32 %v119, 8388607
  %v121 = vor.u32 %v120, 8388608
  %v122 = vsub.s32 0, %v121
  %v123 = vadd.s32 %v118, 1
  %vm124 = vcmp.gt.s32.totalorder %v123, 0
  %v125 = vsel %vm124, %v123, 0
  %v126 = vshrl.u32 %v125, 5
  %v127 = vand.u32 %v125, 31
  %v128 = vsub.s32 32, %v127
  %v129 = vshrl.u32 683565275, %v128
  %v130 = vshll.u32 683565275, %v127
  %v131 = vshrl.u32 2475754826, %v128
  %v132 = vor.u32 %v130, %v131
  %v133 = vshll.u32 2475754826, %v127
  %v134 = vshrl.u32 2131351028, %v128
  %v135 = vor.u32 %v133, %v134
  %v136 = vshll.u32 2131351028, %v127
  %v137 = vshrl.u32 2102212464, %v128
  %v138 = vor.u32 %v136, %v137
  %v139 = vshll.u32 2102212464, %v127
  %v140 = vshrl.u32 920167782, %v128
  %v141 = vor.u32 %v139, %v140
  %v142 = vshll.u32 920167782, %v127
  %v143 = vshrl.u32 1326507024, %v128
  %v144 = vor.u32 %v142, %v143
  %vm145 = vcmp.lt.s32.totalorder %v126, 1
  %vm146 = vcmp.lt.s32.totalorder %v126, 2
  %vm147 = vcmp.lt.s32.totalorder %v126, 3
  %vm148 = vcmp.lt.s32.totalorder %v126, 4
  %v149 = vsel %vm145, %v129, %v132
  %v150 = vsel %vm148, %v138, 2102212464
  %v151 = vsel %vm147, %v135, %v150
  %v152 = vsel %vm146, %v149, %v151
  %v153 = vsel %vm145, %v132, %v135
  %v154 = vsel %vm148, %v141, 920167782
  %v155 = vsel %vm147, %v138, %v154
  %v156 = vsel %vm146, %v153, %v155
  %v157 = vsel %vm145, %v135, %v138
  %v158 = vsel %vm148, %v144, 1326507024
  %v159 = vsel %vm147, %v141, %v158
  %v160 = vsel %vm146, %v157, %v159
  %v161 = vshll.u32 %v121, 8
  %v162 = vmul.u32.u64.compose %v161, %v160
  %v163 = vextract.low.u32 %v162
  %v164 = vextract.high.u32 %v162
  %v165 = vmul.u32.u64.compose %v161, %v156
  %v166 = vextract.low.u32 %v165
  %v167 = vextract.high.u32 %v165
  %v168 = vmul.u32 %v161, %v152
  %v169 = vadd.s32 %v164, %v166
  %vm170 = vc.u32 %v164, %v166
  %v171 = vadd.s32 %v167, 1
  %v172 = vsel %vm170, %v171, %v167
  %v173 = vadd.s32 %v168, %v172
  %v174 = vadd.s32 %v173, 536870912
  %v175 = vshrl.u32 %v174, 30
  %v176 = vshll.u32 %v175, 30
  %v177 = vsub.s32 %v173, %v176
  %vm178 = vcmp.lt.s32.totalorder %v177, 0
  %v179 = vsub.s32 0, %v177
  %v180 = vsel %vm178, %v179, %v177
  %v181 = vclz %v180
  %v182 = vsub.s32 %v181, 2
  %vm183 = vcmp.gt.s32.totalorder 0, %v182
  %v184 = vsel %vm183, 0, %v182
  %v185 = vsub.s32 32, %v184
  %v186 = vshll.u32 %v177, %v184
  %v187 = vshrl.u32 %v169, %v185
  %v188 = vor.u32 %v186, %v187
  %v189 = vsub.s32 4294967266, %v184
  %v190 = vadd.s32 %v189, 127
  %v191 = vshll.u32 %v190, 23
  %v192 = vor.u32 4788187, %v191
  %v193 = vand.u32 2147483647, %v192
  %v195 = vcvt.s32.f32 %v188
  %v196 = vmul.f32 %v195, %v193
  %v197 = vxor.u32 %v196, 2147483648
  %v198 = vsel %vm115, %v197, %v196
  %v199 = vsub.s32 4, %v175
  %v200 = vsel %vm115, %v199, %v175
  %v201 = vsel %vm114, %v112, %v198
  %v202 = vsel %vm114, 0, %v200
  %v203 = vcosq.f32.pop %v201
  %v204 = vsinq.f32.pop %v201
  %vm205 = vweird.f32 %v112
  %v206 = vand.u32 %v202, 3
  %vm207 = vcmp.lt.s32.totalorder %v206, 2
  %vm208 = vcmp.eq.s32.totalorder %v206, 0
  %v209 = vxor.u32 %v204, 2147483648
  %v210 = vsel %vm208, %v203, %v209
  %vm211 = vcmp.eq.s32.totalorder %v206, 2
  %v212 = vxor.u32 %v203, 2147483648
  %v213 = vsel %vm211, %v212, %v204
  %v214 = vsel %vm207, %v210, %v213
  %v215 = vsel %vm205, nan, %v214
  %216 = vst [vmem:[%s4] sm:$0xff] %v215
  // Predicated region
  $region18: #{time_encoder.1} parent=0 // pred_check
    _
  $region19: #{time_encoder.1} parent=0 // pred_check_branch
    %218 = sbr.rel (0) target = $region21
  $region20: #{time_encoder.1} parent=0 // pred_region
    _
  $region21: #{time_encoder.1} parent=0 // pred_fallthru
    _
  // Predicated region
  $region22: #{time_encoder.1} parent=0 // pred_check
    _
  $region23: #{time_encoder.1} parent=0 // pred_check_branch
    %220 = sbr.rel (0) target = $region25
  $region24: #{time_encoder.1} parent=0 // pred_region
    _
  $region25: #{time_encoder.1} parent=0 // pred_fallthru
    _

</llo_original>
